<compile_context>
chip_gen: v6e
topology: v6e:2x2x1
jax: 0.10.0
libtpu: 0.0.40
codegen_flags: <defaults>
</compile_context>

<pallas_src>
import math
from functools import partial

import numpy as np
import jax
import jax.numpy as jnp
from jax.experimental import pallas as pl
from jax.experimental.pallas import tpu as pltpu


def _gelu_tanh(x):
    # tanh-approximate GELU (EUP-friendly; max |err| vs exact erf GELU ~3e-4).
    c = math.sqrt(2.0 / math.pi)
    return 0.5 * x * (1.0 + jnp.tanh(c * (x + 0.044715 * (x * x * x))))


def _focal_attention_kernel(x_ref, wf_ref, wh_ref, *rest,
                            mid_pad, W, inv_hw, focal_window, inv_nlvl):
    nlvl = len(focal_window)
    w3_refs = rest[:nlvl]
    mask_refs = rest[nlvl:2 * nlvl]
    out_ref = rest[2 * nlvl]

    Bt, C, P = x_ref.shape

    # f projection: bf16 batched MXU matmul, f32 accumulation. The in-register
    # bf16 cast of x is a few vregs per image; casting in HBM would need a
    # separate full read+write pass over x.
    xb = x_ref[...].astype(jnp.bfloat16)                       # (Bt, C, P)
    wf_b = jnp.broadcast_to(wf_ref[...][None], (Bt,) + tuple(wf_ref.shape))
    f_out = jnp.einsum("bok,bkl->bol", wf_b, xb,
                       preferred_element_type=jnp.float32)     # (Bt, 2*mid, P)
    ctx = f_out[:, :mid_pad, :]                                # (Bt, 8, P)
    gates = f_out[:, mid_pad:, :]                              # (Bt, 8, P)

    ctx_all = jnp.zeros_like(ctx)
    for l in range(nlvl):
        ksz = focal_window[l]
        r = ksz // 2
        masks = mask_refs[l][...]                              # (ksz*ksz, P)
        ctx2 = ctx.reshape(Bt * mid_pad, P)                    # 2-D lane rolls
        cols = []
        for kh in range(ksz):
            for kw in range(ksz):
                t = kh * ksz + kw
                d = (kh - r) * W + (kw - r)
                if d == 0:
                    shifted = ctx2
                else:
                    # shifted[:, j] = ctx2[:, j + d]; wrap-around / padded-lane
                    # leakage is zeroed by the precomputed boundary mask.
                    shifted = pltpu.roll(ctx2, shift=(-d) % P, axis=1)
                col = shifted * masks[t:t + 1, :]
                cols.append(col.reshape(Bt, mid_pad, P))
        # im2col: one bf16 MXU matmul per level (bf16 slab + bf16 weights).
        slab = jnp.concatenate(cols, axis=1).astype(jnp.bfloat16)  # (Bt,72,P)
        w3_b = jnp.broadcast_to(w3_refs[l][...][None],
                                (Bt,) + tuple(w3_refs[l].shape))
        acc = jnp.einsum("bok,bkl->bol", w3_b, slab,
                         preferred_element_type=jnp.float32)   # (Bt, 8, P)
        ctx = _gelu_tanh(acc)                                  # Conv2d + GELU
        ctx_all = ctx_all + ctx * gates[:, l:l + 1, :]

    # Global context: per-image mean over the lane axis (padded lanes are
    # exact zeros), GELU, broadcast back, gated.
    mean = jnp.sum(ctx, axis=2, keepdims=True) * inv_hw        # (Bt, 8, 1)
    ctx_all = ctx_all + _gelu_tanh(mean) * gates[:, nlvl:nlvl + 1, :]
    ctx_all = ctx_all * inv_nlvl

    # h: 1x1 conv == weighted sum over the (padded) mid channels, then sigmoid.
    out = jnp.sum(ctx_all * wh_ref[...], axis=1, keepdims=True)  # (Bt, 1, P)
    out_ref[...] = jax.nn.sigmoid(out)


def _vmem_capacity_bytes():
    try:
        info = pltpu.get_tpu_info()
        cap = int(getattr(info, "vmem_capacity_bytes", 0))
        if cap > 0:
            return cap
    except Exception:
        pass
    return 64 << 20      # conservative default: v7x physical VMEM per core


def _pick_batch_tile(B, C, P, mid_pad, n_taps_max, vmem_cap):
    """Images per grid step: big enough to amortize per-step overhead, small
    enough for the per-generation VMEM budget, and (when B >= 2) small enough
    that the parallel grid has >= 2 steps for the v7x megacore."""
    per_image = (2 * C * P * 4                     # x block (double buffered)
                 + 2 * mid_pad * P * 4             # f_out (ctx + gate rows)
                 + 4 * mid_pad * P * 4             # ctx / ctx_all / acc / temps
                 + n_taps_max * mid_pad * P * 4    # f32 im2col cols
                 + n_taps_max * mid_pad * P * 2    # bf16 slab
                 + 2 * P * 4)                      # out block (double buffered)
    budget = min(vmem_cap // 3, 24 << 20)
    bt = max(1, min(B, budget // max(per_image, 1)))
    bt = min(bt, 32)                   # bound batched-matmul unrolling
    if B >= 2:
        bt = min(bt, -(-B // 2))       # keep >= 2 grid steps (megacore)
    return int(bt), int(per_image)


def focal_attention(x_nchw, wf, w3_list, wh4, *, mid_dim=4, focal_window=(3, 3)):
    """FocalAttention forward.

    x_nchw : (B, C, H, W) f32
    wf     : (mid_dim + L + 1, C)   nn.Linear(dim, mid+L+1, bias=False).weight
    w3_list: list of L arrays (mid, mid, k, k)  Conv2d weights (OIHW)
    wh4    : (1, mid, 1, 1)         Conv2d(mid, 1, 1, bias=False).weight
    Returns (B, 1, H, W) f32.
    """
    B, C, H, W = x_nchw.shape
    nlvl = len(focal_window)
    HW = H * W
    P = ((HW + 127) // 128) * 128                 # lane-dense spatial dim
    mid_pad = ((mid_dim + 7) // 8) * 8            # sublane-dense channels
    assert nlvl + 1 <= mid_pad, "too many focal levels for the gate padding"

    vmem_cap = _vmem_capacity_bytes()
    n_taps_max = max(int(k) * int(k) for k in focal_window)
    Bt, per_image = _pick_batch_tile(B, C, P, mid_pad, n_taps_max, vmem_cap)
    G = -(-B // Bt)
    B_pad = G * Bt

    # x stays f32 and in its natural (B, C, H*W) layout: no wrapper-side
    # transpose / dtype-cast pass over HBM.  Pads (copies) only when needed.
    x = x_nchw.reshape(B, C, HW)
    if P != HW:
        x = jnp.pad(x, ((0, 0), (0, 0), (0, P - HW)))
    if B_pad != B:
        x = jnp.pad(x, ((0, B_pad - B), (0, 0), (0, 0)))

    # ---- weights, zero-padded to full 8-sublane tiles ----
    wf = jnp.asarray(wf, jnp.float32)
    wf_all = jnp.zeros((2 * mid_pad, C), jnp.float32)
    wf_all = wf_all.at[:mid_dim].set(wf[:mid_dim])                    # ctx rows
    wf_all = wf_all.at[mid_pad:mid_pad + nlvl + 1].set(wf[mid_dim:])  # gates
    wf_all = wf_all.astype(jnp.bfloat16)                              # bf16 MXU

    wh = jnp.zeros((mid_pad, 1), jnp.float32)
    wh = wh.at[:mid_dim, 0].set(jnp.asarray(wh4, jnp.float32)[0, :, 0, 0])

    # ---- host-side constants: im2col conv weights (bf16), boundary masks ----
    lane = np.arange(P)
    hh, ww = lane // W, lane % W
    real = lane < HW
    w3_flats, mask_arrs = [], []
    for l in range(nlvl):
        ksz = int(focal_window[l])
        r = ksz // 2
        w_np = np.asarray(w3_list[l], np.float32)     # (mid, mid, k, k) OIHW
        wfl = np.zeros((mid_pad, mid_pad * ksz * ksz), np.float32)
        msk = np.zeros((ksz * ksz, P), np.float32)
        for kh in range(ksz):
            for kw in range(ksz):
                t = kh * ksz + kw
                wfl[:mid_dim, t * mid_pad:t * mid_pad + mid_dim] = w_np[:, :, kh, kw]
                oh, ow = kh - r, kw - r
                msk[t] = (real & (hh + oh >= 0) & (hh + oh < H)
                          & (ww + ow >= 0) & (ww + ow < W)).astype(np.float32)
        w3_flats.append(jnp.asarray(wfl, jnp.bfloat16))
        mask_arrs.append(jnp.asarray(msk))

    kernel = partial(_focal_attention_kernel, mid_pad=mid_pad, W=W,
                     inv_hw=1.0 / HW,
                     focal_window=tuple(int(k) for k in focal_window),
                     inv_nlvl=1.0 / (nlvl + 1))

    in_specs = ([
        pl.BlockSpec((Bt, C, P), lambda g: (g, 0, 0)),
        pl.BlockSpec(wf_all.shape, lambda g: (0, 0)),
        pl.BlockSpec(wh.shape, lambda g: (0, 0)),
    ] + [pl.BlockSpec(w.shape, lambda g: (0, 0)) for w in w3_flats]
      + [pl.BlockSpec(m.shape, lambda g: (0, 0)) for m in mask_arrs])

    est = per_image * Bt + (4 << 20)
    vmem_limit = int(min(vmem_cap * 3 // 4, max(2 * est, 32 << 20)))

    out = pl.pallas_call(
        kernel,
        out_shape=jax.ShapeDtypeStruct((B_pad, 1, P), jnp.float32),
        grid=(G,),
        in_specs=in_specs,
        out_specs=pl.BlockSpec((Bt, 1, P), lambda g: (g, 0, 0)),
        compiler_params=pltpu.CompilerParams(
            dimension_semantics=("parallel",),
            vmem_limit_bytes=vmem_limit),
    )(x, wf_all, wh, *w3_flats, *mask_arrs)

    return out[:B, :, :HW].reshape(B, 1, H, W)


def _reference(x, wf, w3_list, wh4):
    """Pure-JAX reference matching the PyTorch forward exactly (NCHW)."""
    mid = w3_list[0].shape[0]
    xp = jnp.transpose(x, (0, 2, 3, 1))                     # (B,H,W,C)
    f = jnp.einsum("bhwc,oc->bhwo", xp, wf)
    f = jnp.transpose(f, (0, 3, 1, 2))                      # (B,mid+L+1,H,W)
    ctx, gates = f[:, :mid], f[:, mid:]
    ctx_all = 0.0
    for l, wc in enumerate(w3_list):
        ctx = jax.nn.gelu(
            jax.lax.conv_general_dilated(
                ctx, wc, (1, 1), "SAME",
                dimension_numbers=("NCHW", "OIHW", "NCHW")),
            approximate=False)
        ctx_all = ctx_all + ctx * gates[:, l:l + 1]
    ctx_global = jax.nn.gelu(jnp.mean(ctx, axis=(2, 3), keepdims=True),
                             approximate=False)
    ctx_all = ctx_all + ctx_global * gates[:, len(w3_list):]
    ctx_all = ctx_all / (len(w3_list) + 1)
    out = jax.lax.conv_general_dilated(
        ctx_all, wh4, (1, 1), "VALID",
        dimension_numbers=("NCHW", "OIHW", "NCHW"))
    return jax.nn.sigmoid(out)


if __name__ == "__main__":
    def _run_case(key, B, dim, H, W, mid_dim=4, focal_window=(3, 3)):
        nlvl = len(focal_window)
        k_x, k_f, *k_c, k_h = jax.random.split(key, 3 + nlvl)
        x = jax.random.normal(k_x, (B, dim, H, W), jnp.float32)
        # Parameter shapes from FocalAttention.__init__:
        #   f: Linear(dim, mid+L+1, bias=False)  -> weight (mid+L+1, dim)
        #   focal_layers[k]: Conv2d(mid, mid, k, pad=k//2, bias=False)
        #   h: Conv2d(mid, 1, 1, bias=False)     -> (1, mid, 1, 1)
        wf = jax.random.normal(k_f, (mid_dim + nlvl + 1, dim), jnp.float32) \
            * (1.0 / math.sqrt(dim))
        w3_list = [
            jax.random.normal(
                k_c[l], (mid_dim, mid_dim, focal_window[l], focal_window[l]),
                jnp.float32) * (1.0 / math.sqrt(mid_dim * focal_window[l] ** 2))
            for l in range(nlvl)]
        wh4 = jax.random.normal(k_h, (1, mid_dim, 1, 1), jnp.float32) \
            * (1.0 / math.sqrt(mid_dim))

        out = jax.block_until_ready(
            focal_attention(x, wf, w3_list, wh4,
                            mid_dim=mid_dim, focal_window=focal_window))
        ref = _reference(x, wf, w3_list, wh4)
        assert out.shape == (B, 1, H, W), out.shape
        max_err = float(jnp.max(jnp.abs(out - ref)))
        assert max_err < 2e-2, max_err

    root = jax.random.PRNGKey(0)
    k1, k2 = jax.random.split(root)
    # Case 1: H*W multiple of 128, even batch (G=2 grid steps).
    _run_case(k1, B=2, dim=32, H=16, W=16)
    # Case 2: padded spatial lanes (H*W=100 -> 128) and odd batch (batch pad).
    _run_case(k2, B=3, dim=32, H=10, W=10)
    print("KERNEL_OK")
</pallas_src>

<mosaic_0001>
module attributes {stable_mosaic.version = 11 : i64} {
  func.func @_focal_attention_kernel(%arg0: i32, %arg1: memref<1x32x256xf32, #tpu.memory_space<vmem>>, %arg2: memref<16x32xbf16, #tpu.memory_space<vmem>>, %arg3: memref<8x1xf32, #tpu.memory_space<vmem>>, %arg4: memref<8x72xbf16, #tpu.memory_space<vmem>>, %arg5: memref<8x72xbf16, #tpu.memory_space<vmem>>, %arg6: memref<9x256xf32, #tpu.memory_space<vmem>>, %arg7: memref<9x256xf32, #tpu.memory_space<vmem>>, %arg8: memref<1x1x256xf32, #tpu.memory_space<vmem>>) attributes {dimension_semantics = [#tpu.dimension_semantics<parallel>], iteration_bounds = array<i64: 2>, scalar_prefetch = 0 : i64, scratch_operands = 0 : i64, tpu.core_type = #tpu.core_type<tc>, window_params = [{transform_indices = @transform_0, window_bounds = array<i64: 1, 32, 256>}, {pipeline_mode = #tpu.pipeline_mode<synchronous>, transform_indices = @transform_1, window_bounds = array<i64: 16, 32>}, {pipeline_mode = #tpu.pipeline_mode<synchronous>, transform_indices = @transform_2, window_bounds = array<i64: 8, 1>}, {pipeline_mode = #tpu.pipeline_mode<synchronous>, transform_indices = @transform_3, window_bounds = array<i64: 8, 72>}, {pipeline_mode = #tpu.pipeline_mode<synchronous>, transform_indices = @transform_4, window_bounds = array<i64: 8, 72>}, {pipeline_mode = #tpu.pipeline_mode<synchronous>, transform_indices = @transform_5, window_bounds = array<i64: 9, 256>}, {pipeline_mode = #tpu.pipeline_mode<synchronous>, transform_indices = @transform_6, window_bounds = array<i64: 9, 256>}, {transform_indices = @transform_7, window_bounds = array<i64: 1, 1, 256>}]} {
    %c0 = arith.constant 0 : index
    %c0_0 = arith.constant 0 : index
    %c0_1 = arith.constant 0 : index
    %0 = vector.load %arg1[%c0, %c0_0, %c0_1] : memref<1x32x256xf32, #tpu.memory_space<vmem>>, vector<1x32x256xf32>
    %1 = arith.truncf %0 : vector<1x32x256xf32> to vector<1x32x256xbf16>
    %c0_2 = arith.constant 0 : index
    %c0_3 = arith.constant 0 : index
    %2 = vector.load %arg2[%c0_2, %c0_3] : memref<16x32xbf16, #tpu.memory_space<vmem>>, vector<16x32xbf16>
    %3 = vector.shape_cast %2 : vector<16x32xbf16> to vector<1x16x32xbf16>
    "tpu.trace_start"() <{level = 10 : i32, message = "bok,bkl->bol"}> : () -> ()
    %cst = arith.constant dense<0.000000e+00> : vector<1x16x256xf32>
    %4 = tpu.matmul %3, %1, %cst {dimension_numbers = #tpu.dot_dimension_numbers<[2], [1], [1], [2], [0, 0, 0, 1, 1, 2], [0], [0]>} : vector<1x16x32xbf16>, vector<1x32x256xbf16>, vector<1x16x256xf32> -> vector<1x16x256xf32>
    "tpu.trace_stop"() : () -> ()
    %5 = vector.extract_strided_slice %4 {offsets = [0, 0, 0], sizes = [1, 8, 256], strides = [1, 1, 1]} : vector<1x16x256xf32> to vector<1x8x256xf32>
    %6 = vector.extract_strided_slice %4 {offsets = [0, 8, 0], sizes = [1, 8, 256], strides = [1, 1, 1]} : vector<1x16x256xf32> to vector<1x8x256xf32>
    %cst_4 = arith.constant 0.000000e+00 : f32
    %7 = vector.broadcast %cst_4 : f32 to vector<1x8x256xf32>
    %c0_5 = arith.constant 0 : index
    %c0_6 = arith.constant 0 : index
    %8 = vector.load %arg6[%c0_5, %c0_6] : memref<9x256xf32, #tpu.memory_space<vmem>>, vector<9x256xf32>
    %9 = vector.shape_cast %5 : vector<1x8x256xf32> to vector<8x256xf32>
    %c17_i32 = arith.constant 17 : i32
    %10 = tpu.dynamic_rotate %9 by %c17_i32 dim 1 : vector<8x256xf32>, i32 -> vector<8x256xf32>
    %11 = vector.extract_strided_slice %8 {offsets = [0, 0], sizes = [1, 256], strides = [1, 1]} : vector<9x256xf32> to vector<1x256xf32>
    %12 = vector.broadcast %11 : vector<1x256xf32> to vector<8x256xf32>
    %13 = arith.mulf %10, %12 : vector<8x256xf32>
    %14 = vector.shape_cast %13 : vector<8x256xf32> to vector<1x8x256xf32>
    %c16_i32 = arith.constant 16 : i32
    %15 = tpu.dynamic_rotate %9 by %c16_i32 dim 1 : vector<8x256xf32>, i32 -> vector<8x256xf32>
    %16 = vector.extract_strided_slice %8 {offsets = [1, 0], sizes = [1, 256], strides = [1, 1]} : vector<9x256xf32> to vector<1x256xf32>
    %17 = vector.broadcast %16 : vector<1x256xf32> to vector<8x256xf32>
    %18 = arith.mulf %15, %17 : vector<8x256xf32>
    %19 = vector.shape_cast %18 : vector<8x256xf32> to vector<1x8x256xf32>
    %c15_i32 = arith.constant 15 : i32
    %20 = tpu.dynamic_rotate %9 by %c15_i32 dim 1 : vector<8x256xf32>, i32 -> vector<8x256xf32>
    %21 = vector.extract_strided_slice %8 {offsets = [2, 0], sizes = [1, 256], strides = [1, 1]} : vector<9x256xf32> to vector<1x256xf32>
    %22 = vector.broadcast %21 : vector<1x256xf32> to vector<8x256xf32>
    %23 = arith.mulf %20, %22 : vector<8x256xf32>
    %24 = vector.shape_cast %23 : vector<8x256xf32> to vector<1x8x256xf32>
    %c1_i32 = arith.constant 1 : i32
    %25 = tpu.dynamic_rotate %9 by %c1_i32 dim 1 : vector<8x256xf32>, i32 -> vector<8x256xf32>
    %26 = vector.extract_strided_slice %8 {offsets = [3, 0], sizes = [1, 256], strides = [1, 1]} : vector<9x256xf32> to vector<1x256xf32>
    %27 = vector.broadcast %26 : vector<1x256xf32> to vector<8x256xf32>
    %28 = arith.mulf %25, %27 : vector<8x256xf32>
    %29 = vector.shape_cast %28 : vector<8x256xf32> to vector<1x8x256xf32>
    %30 = vector.extract_strided_slice %8 {offsets = [4, 0], sizes = [1, 256], strides = [1, 1]} : vector<9x256xf32> to vector<1x256xf32>
    %31 = vector.broadcast %30 : vector<1x256xf32> to vector<8x256xf32>
    %32 = arith.mulf %9, %31 : vector<8x256xf32>
    %33 = vector.shape_cast %32 : vector<8x256xf32> to vector<1x8x256xf32>
    %c255_i32 = arith.constant 255 : i32
    %34 = tpu.dynamic_rotate %9 by %c255_i32 dim 1 : vector<8x256xf32>, i32 -> vector<8x256xf32>
    %35 = vector.extract_strided_slice %8 {offsets = [5, 0], sizes = [1, 256], strides = [1, 1]} : vector<9x256xf32> to vector<1x256xf32>
    %36 = vector.broadcast %35 : vector<1x256xf32> to vector<8x256xf32>
    %37 = arith.mulf %34, %36 : vector<8x256xf32>
    %38 = vector.shape_cast %37 : vector<8x256xf32> to vector<1x8x256xf32>
    %c241_i32 = arith.constant 241 : i32
    %39 = tpu.dynamic_rotate %9 by %c241_i32 dim 1 : vector<8x256xf32>, i32 -> vector<8x256xf32>
    %40 = vector.extract_strided_slice %8 {offsets = [6, 0], sizes = [1, 256], strides = [1, 1]} : vector<9x256xf32> to vector<1x256xf32>
    %41 = vector.broadcast %40 : vector<1x256xf32> to vector<8x256xf32>
    %42 = arith.mulf %39, %41 : vector<8x256xf32>
    %43 = vector.shape_cast %42 : vector<8x256xf32> to vector<1x8x256xf32>
    %c240_i32 = arith.constant 240 : i32
    %44 = tpu.dynamic_rotate %9 by %c240_i32 dim 1 : vector<8x256xf32>, i32 -> vector<8x256xf32>
    %45 = vector.extract_strided_slice %8 {offsets = [7, 0], sizes = [1, 256], strides = [1, 1]} : vector<9x256xf32> to vector<1x256xf32>
    %46 = vector.broadcast %45 : vector<1x256xf32> to vector<8x256xf32>
    %47 = arith.mulf %44, %46 : vector<8x256xf32>
    %48 = vector.shape_cast %47 : vector<8x256xf32> to vector<1x8x256xf32>
    %c239_i32 = arith.constant 239 : i32
    %49 = tpu.dynamic_rotate %9 by %c239_i32 dim 1 : vector<8x256xf32>, i32 -> vector<8x256xf32>
    %50 = vector.extract_strided_slice %8 {offsets = [8, 0], sizes = [1, 256], strides = [1, 1]} : vector<9x256xf32> to vector<1x256xf32>
    %51 = vector.broadcast %50 : vector<1x256xf32> to vector<8x256xf32>
    %52 = arith.mulf %49, %51 : vector<8x256xf32>
    %53 = vector.shape_cast %52 : vector<8x256xf32> to vector<1x8x256xf32>
    %54 = tpu.concatenate %14, %19, %24, %29, %33, %38, %43, %48, %53 in 1 : vector<1x8x256xf32>, vector<1x8x256xf32>, vector<1x8x256xf32>, vector<1x8x256xf32>, vector<1x8x256xf32>, vector<1x8x256xf32>, vector<1x8x256xf32>, vector<1x8x256xf32>, vector<1x8x256xf32> -> vector<1x72x256xf32>
    %55 = arith.truncf %54 : vector<1x72x256xf32> to vector<1x72x256xbf16>
    %c0_7 = arith.constant 0 : index
    %c0_8 = arith.constant 0 : index
    %56 = vector.load %arg4[%c0_7, %c0_8] : memref<8x72xbf16, #tpu.memory_space<vmem>>, vector<8x72xbf16>
    %57 = vector.shape_cast %56 : vector<8x72xbf16> to vector<1x8x72xbf16>
    "tpu.trace_start"() <{level = 10 : i32, message = "bok,bkl->bol"}> : () -> ()
    %cst_9 = arith.constant dense<0.000000e+00> : vector<1x8x256xf32>
    %58 = tpu.matmul %57, %55, %cst_9 {dimension_numbers = #tpu.dot_dimension_numbers<[2], [1], [1], [2], [0, 0, 0, 1, 1, 2], [0], [0]>} : vector<1x8x72xbf16>, vector<1x72x256xbf16>, vector<1x8x256xf32> -> vector<1x8x256xf32>
    "tpu.trace_stop"() : () -> ()
    %cst_10 = arith.constant 5.000000e-01 : f32
    %59 = vector.broadcast %cst_10 : f32 to vector<1x8x256xf32>
    %60 = arith.mulf %59, %58 : vector<1x8x256xf32>
    %61 = arith.mulf %58, %58 : vector<1x8x256xf32>
    %62 = arith.mulf %61, %58 : vector<1x8x256xf32>
    %cst_11 = arith.constant 4.471500e-02 : f32
    %63 = vector.broadcast %cst_11 : f32 to vector<1x8x256xf32>
    %64 = arith.mulf %63, %62 : vector<1x8x256xf32>
    %65 = arith.addf %58, %64 : vector<1x8x256xf32>
    %cst_12 = arith.constant 0.797884583 : f32
    %66 = vector.broadcast %cst_12 : f32 to vector<1x8x256xf32>
    %67 = arith.mulf %66, %65 : vector<1x8x256xf32>
    %68 = math.tanh %67 : vector<1x8x256xf32>
    %cst_13 = arith.constant 1.000000e+00 : f32
    %69 = vector.broadcast %cst_13 : f32 to vector<1x8x256xf32>
    %70 = arith.addf %69, %68 : vector<1x8x256xf32>
    %71 = arith.mulf %60, %70 : vector<1x8x256xf32>
    %72 = vector.extract_strided_slice %6 {offsets = [0, 0, 0], sizes = [1, 1, 256], strides = [1, 1, 1]} : vector<1x8x256xf32> to vector<1x1x256xf32>
    %73 = vector.broadcast %72 : vector<1x1x256xf32> to vector<1x8x256xf32>
    %74 = arith.mulf %71, %73 : vector<1x8x256xf32>
    %75 = arith.addf %7, %74 : vector<1x8x256xf32>
    %c0_14 = arith.constant 0 : index
    %c0_15 = arith.constant 0 : index
    %76 = vector.load %arg7[%c0_14, %c0_15] : memref<9x256xf32, #tpu.memory_space<vmem>>, vector<9x256xf32>
    %77 = vector.shape_cast %71 : vector<1x8x256xf32> to vector<8x256xf32>
    %c17_i32_16 = arith.constant 17 : i32
    %78 = tpu.dynamic_rotate %77 by %c17_i32_16 dim 1 : vector<8x256xf32>, i32 -> vector<8x256xf32>
    %79 = vector.extract_strided_slice %76 {offsets = [0, 0], sizes = [1, 256], strides = [1, 1]} : vector<9x256xf32> to vector<1x256xf32>
    %80 = vector.broadcast %79 : vector<1x256xf32> to vector<8x256xf32>
    %81 = arith.mulf %78, %80 : vector<8x256xf32>
    %82 = vector.shape_cast %81 : vector<8x256xf32> to vector<1x8x256xf32>
    %c16_i32_17 = arith.constant 16 : i32
    %83 = tpu.dynamic_rotate %77 by %c16_i32_17 dim 1 : vector<8x256xf32>, i32 -> vector<8x256xf32>
    %84 = vector.extract_strided_slice %76 {offsets = [1, 0], sizes = [1, 256], strides = [1, 1]} : vector<9x256xf32> to vector<1x256xf32>
    %85 = vector.broadcast %84 : vector<1x256xf32> to vector<8x256xf32>
    %86 = arith.mulf %83, %85 : vector<8x256xf32>
    %87 = vector.shape_cast %86 : vector<8x256xf32> to vector<1x8x256xf32>
    %c15_i32_18 = arith.constant 15 : i32
    %88 = tpu.dynamic_rotate %77 by %c15_i32_18 dim 1 : vector<8x256xf32>, i32 -> vector<8x256xf32>
    %89 = vector.extract_strided_slice %76 {offsets = [2, 0], sizes = [1, 256], strides = [1, 1]} : vector<9x256xf32> to vector<1x256xf32>
    %90 = vector.broadcast %89 : vector<1x256xf32> to vector<8x256xf32>
    %91 = arith.mulf %88, %90 : vector<8x256xf32>
    %92 = vector.shape_cast %91 : vector<8x256xf32> to vector<1x8x256xf32>
    %c1_i32_19 = arith.constant 1 : i32
    %93 = tpu.dynamic_rotate %77 by %c1_i32_19 dim 1 : vector<8x256xf32>, i32 -> vector<8x256xf32>
    %94 = vector.extract_strided_slice %76 {offsets = [3, 0], sizes = [1, 256], strides = [1, 1]} : vector<9x256xf32> to vector<1x256xf32>
    %95 = vector.broadcast %94 : vector<1x256xf32> to vector<8x256xf32>
    %96 = arith.mulf %93, %95 : vector<8x256xf32>
    %97 = vector.shape_cast %96 : vector<8x256xf32> to vector<1x8x256xf32>
    %98 = vector.extract_strided_slice %76 {offsets = [4, 0], sizes = [1, 256], strides = [1, 1]} : vector<9x256xf32> to vector<1x256xf32>
    %99 = vector.broadcast %98 : vector<1x256xf32> to vector<8x256xf32>
    %100 = arith.mulf %77, %99 : vector<8x256xf32>
    %101 = vector.shape_cast %100 : vector<8x256xf32> to vector<1x8x256xf32>
    %c255_i32_20 = arith.constant 255 : i32
    %102 = tpu.dynamic_rotate %77 by %c255_i32_20 dim 1 : vector<8x256xf32>, i32 -> vector<8x256xf32>
    %103 = vector.extract_strided_slice %76 {offsets = [5, 0], sizes = [1, 256], strides = [1, 1]} : vector<9x256xf32> to vector<1x256xf32>
    %104 = vector.broadcast %103 : vector<1x256xf32> to vector<8x256xf32>
    %105 = arith.mulf %102, %104 : vector<8x256xf32>
    %106 = vector.shape_cast %105 : vector<8x256xf32> to vector<1x8x256xf32>
    %c241_i32_21 = arith.constant 241 : i32
    %107 = tpu.dynamic_rotate %77 by %c241_i32_21 dim 1 : vector<8x256xf32>, i32 -> vector<8x256xf32>
    %108 = vector.extract_strided_slice %76 {offsets = [6, 0], sizes = [1, 256], strides = [1, 1]} : vector<9x256xf32> to vector<1x256xf32>
    %109 = vector.broadcast %108 : vector<1x256xf32> to vector<8x256xf32>
    %110 = arith.mulf %107, %109 : vector<8x256xf32>
    %111 = vector.shape_cast %110 : vector<8x256xf32> to vector<1x8x256xf32>
    %c240_i32_22 = arith.constant 240 : i32
    %112 = tpu.dynamic_rotate %77 by %c240_i32_22 dim 1 : vector<8x256xf32>, i32 -> vector<8x256xf32>
    %113 = vector.extract_strided_slice %76 {offsets = [7, 0], sizes = [1, 256], strides = [1, 1]} : vector<9x256xf32> to vector<1x256xf32>
    %114 = vector.broadcast %113 : vector<1x256xf32> to vector<8x256xf32>
    %115 = arith.mulf %112, %114 : vector<8x256xf32>
    %116 = vector.shape_cast %115 : vector<8x256xf32> to vector<1x8x256xf32>
    %c239_i32_23 = arith.constant 239 : i32
    %117 = tpu.dynamic_rotate %77 by %c239_i32_23 dim 1 : vector<8x256xf32>, i32 -> vector<8x256xf32>
    %118 = vector.extract_strided_slice %76 {offsets = [8, 0], sizes = [1, 256], strides = [1, 1]} : vector<9x256xf32> to vector<1x256xf32>
    %119 = vector.broadcast %118 : vector<1x256xf32> to vector<8x256xf32>
    %120 = arith.mulf %117, %119 : vector<8x256xf32>
    %121 = vector.shape_cast %120 : vector<8x256xf32> to vector<1x8x256xf32>
    %122 = tpu.concatenate %82, %87, %92, %97, %101, %106, %111, %116, %121 in 1 : vector<1x8x256xf32>, vector<1x8x256xf32>, vector<1x8x256xf32>, vector<1x8x256xf32>, vector<1x8x256xf32>, vector<1x8x256xf32>, vector<1x8x256xf32>, vector<1x8x256xf32>, vector<1x8x256xf32> -> vector<1x72x256xf32>
    %123 = arith.truncf %122 : vector<1x72x256xf32> to vector<1x72x256xbf16>
    %c0_24 = arith.constant 0 : index
    %c0_25 = arith.constant 0 : index
    %124 = vector.load %arg5[%c0_24, %c0_25] : memref<8x72xbf16, #tpu.memory_space<vmem>>, vector<8x72xbf16>
    %125 = vector.shape_cast %124 : vector<8x72xbf16> to vector<1x8x72xbf16>
    "tpu.trace_start"() <{level = 10 : i32, message = "bok,bkl->bol"}> : () -> ()
    %cst_26 = arith.constant dense<0.000000e+00> : vector<1x8x256xf32>
    %126 = tpu.matmul %125, %123, %cst_26 {dimension_numbers = #tpu.dot_dimension_numbers<[2], [1], [1], [2], [0, 0, 0, 1, 1, 2], [0], [0]>} : vector<1x8x72xbf16>, vector<1x72x256xbf16>, vector<1x8x256xf32> -> vector<1x8x256xf32>
    "tpu.trace_stop"() : () -> ()
    %cst_27 = arith.constant 5.000000e-01 : f32
    %127 = vector.broadcast %cst_27 : f32 to vector<1x8x256xf32>
    %128 = arith.mulf %127, %126 : vector<1x8x256xf32>
    %129 = arith.mulf %126, %126 : vector<1x8x256xf32>
    %130 = arith.mulf %129, %126 : vector<1x8x256xf32>
    %cst_28 = arith.constant 4.471500e-02 : f32
    %131 = vector.broadcast %cst_28 : f32 to vector<1x8x256xf32>
    %132 = arith.mulf %131, %130 : vector<1x8x256xf32>
    %133 = arith.addf %126, %132 : vector<1x8x256xf32>
    %cst_29 = arith.constant 0.797884583 : f32
    %134 = vector.broadcast %cst_29 : f32 to vector<1x8x256xf32>
    %135 = arith.mulf %134, %133 : vector<1x8x256xf32>
    %136 = math.tanh %135 : vector<1x8x256xf32>
    %cst_30 = arith.constant 1.000000e+00 : f32
    %137 = vector.broadcast %cst_30 : f32 to vector<1x8x256xf32>
    %138 = arith.addf %137, %136 : vector<1x8x256xf32>
    %139 = arith.mulf %128, %138 : vector<1x8x256xf32>
    %140 = vector.extract_strided_slice %6 {offsets = [0, 1, 0], sizes = [1, 1, 256], strides = [1, 1, 1]} : vector<1x8x256xf32> to vector<1x1x256xf32>
    %141 = vector.broadcast %140 : vector<1x1x256xf32> to vector<1x8x256xf32>
    %142 = arith.mulf %139, %141 : vector<1x8x256xf32>
    %143 = arith.addf %75, %142 : vector<1x8x256xf32>
    %cst_31 = arith.constant dense<0.000000e+00> : vector<1x8xf32>
    %144 = vector.multi_reduction <add>, %139, %cst_31 [2] : vector<1x8x256xf32> to vector<1x8xf32>
    %145 = vector.shape_cast %144 : vector<1x8xf32> to vector<1x8x1xf32>
    %cst_32 = arith.constant 3.906250e-03 : f32
    %146 = vector.broadcast %cst_32 : f32 to vector<1x8x1xf32>
    %147 = arith.mulf %145, %146 : vector<1x8x1xf32>
    %cst_33 = arith.constant 5.000000e-01 : f32
    %148 = vector.broadcast %cst_33 : f32 to vector<1x8x1xf32>
    %149 = arith.mulf %148, %147 : vector<1x8x1xf32>
    %150 = arith.mulf %147, %147 : vector<1x8x1xf32>
    %151 = arith.mulf %150, %147 : vector<1x8x1xf32>
    %cst_34 = arith.constant 4.471500e-02 : f32
    %152 = vector.broadcast %cst_34 : f32 to vector<1x8x1xf32>
    %153 = arith.mulf %152, %151 : vector<1x8x1xf32>
    %154 = arith.addf %147, %153 : vector<1x8x1xf32>
    %cst_35 = arith.constant 0.797884583 : f32
    %155 = vector.broadcast %cst_35 : f32 to vector<1x8x1xf32>
    %156 = arith.mulf %155, %154 : vector<1x8x1xf32>
    %157 = math.tanh %156 : vector<1x8x1xf32>
    %cst_36 = arith.constant 1.000000e+00 : f32
    %158 = vector.broadcast %cst_36 : f32 to vector<1x8x1xf32>
    %159 = arith.addf %158, %157 : vector<1x8x1xf32>
    %160 = arith.mulf %149, %159 : vector<1x8x1xf32>
    %161 = vector.extract_strided_slice %6 {offsets = [0, 2, 0], sizes = [1, 1, 256], strides = [1, 1, 1]} : vector<1x8x256xf32> to vector<1x1x256xf32>
    %162 = vector.broadcast %160 : vector<1x8x1xf32> to vector<1x8x256xf32>
    %163 = vector.broadcast %161 : vector<1x1x256xf32> to vector<1x8x256xf32>
    %164 = arith.mulf %162, %163 : vector<1x8x256xf32>
    %165 = arith.addf %143, %164 : vector<1x8x256xf32>
    %cst_37 = arith.constant 0.333333343 : f32
    %166 = vector.broadcast %cst_37 : f32 to vector<1x8x256xf32>
    %167 = arith.mulf %165, %166 : vector<1x8x256xf32>
    %c0_38 = arith.constant 0 : index
    %c0_39 = arith.constant 0 : index
    %168 = vector.load %arg3[%c0_38, %c0_39] : memref<8x1xf32, #tpu.memory_space<vmem>>, vector<8x1xf32>
    %169 = vector.shape_cast %168 : vector<8x1xf32> to vector<1x8x1xf32>
    %170 = vector.broadcast %169 : vector<1x8x1xf32> to vector<1x8x256xf32>
    %171 = arith.mulf %167, %170 : vector<1x8x256xf32>
    %cst_40 = arith.constant dense<0.000000e+00> : vector<1x256xf32>
    %172 = vector.multi_reduction <add>, %171, %cst_40 [1] : vector<1x8x256xf32> to vector<1x256xf32>
    %173 = vector.shape_cast %172 : vector<1x256xf32> to vector<1x1x256xf32>
    %174 = arith.negf %173 : vector<1x1x256xf32>
    %175 = math.exp %174 : vector<1x1x256xf32>
    %cst_41 = arith.constant 1.000000e+00 : f32
    %176 = vector.broadcast %cst_41 : f32 to vector<1x1x256xf32>
    %177 = arith.addf %176, %175 : vector<1x1x256xf32>
    %178 = arith.divf %176, %177 : vector<1x1x256xf32>
    %c0_42 = arith.constant 0 : index
    %c0_43 = arith.constant 0 : index
    %c0_44 = arith.constant 0 : index
    %179 = vector.load %arg8[%c0_42, %c0_43, %c0_44] : memref<1x1x256xf32, #tpu.memory_space<vmem>>, vector<1x1x256xf32>
    tpu.vector_store %arg8[%c0_42, %c0_43, %c0_44], %178 {strides = array<i32>} : memref<1x1x256xf32, #tpu.memory_space<vmem>>, vector<1x1x256xf32>,
    return
  }
  func.func @transform_0(%arg0: i32) -> (i32, i32, i32) {
    %c0_i32 = arith.constant 0 : i32
    %c0_i32_0 = arith.constant 0 : i32
    %c0_i32_1 = arith.constant 0 : i32
    return %arg0, %c0_i32, %c0_i32_0 : i32, i32, i32
  }
  func.func @transform_1(%arg0: i32) -> (i32, i32) {
    %c0_i32 = arith.constant 0 : i32
    %c0_i32_0 = arith.constant 0 : i32
    %c0_i32_1 = arith.constant 0 : i32
    return %c0_i32, %c0_i32_0 : i32, i32
  }
  func.func @transform_2(%arg0: i32) -> (i32, i32) {
    %c0_i32 = arith.constant 0 : i32
    %c0_i32_0 = arith.constant 0 : i32
    %c0_i32_1 = arith.constant 0 : i32
    return %c0_i32, %c0_i32_0 : i32, i32
  }
  func.func @transform_3(%arg0: i32) -> (i32, i32) {
    %c0_i32 = arith.constant 0 : i32
    %c0_i32_0 = arith.constant 0 : i32
    %c0_i32_1 = arith.constant 0 : i32
    return %c0_i32, %c0_i32_0 : i32, i32
  }
  func.func @transform_4(%arg0: i32) -> (i32, i32) {
    %c0_i32 = arith.constant 0 : i32
    %c0_i32_0 = arith.constant 0 : i32
    %c0_i32_1 = arith.constant 0 : i32
    return %c0_i32, %c0_i32_0 : i32, i32
  }
  func.func @transform_5(%arg0: i32) -> (i32, i32) {
    %c0_i32 = arith.constant 0 : i32
    %c0_i32_0 = arith.constant 0 : i32
    %c0_i32_1 = arith.constant 0 : i32
    return %c0_i32, %c0_i32_0 : i32, i32
  }
  func.func @transform_6(%arg0: i32) -> (i32, i32) {
    %c0_i32 = arith.constant 0 : i32
    %c0_i32_0 = arith.constant 0 : i32
    %c0_i32_1 = arith.constant 0 : i32
    return %c0_i32, %c0_i32_0 : i32, i32
  }
  func.func @transform_7(%arg0: i32) -> (i32, i32, i32) {
    %c0_i32 = arith.constant 0 : i32
    %c0_i32_0 = arith.constant 0 : i32
    %c0_i32_1 = arith.constant 0 : i32
    return %arg0, %c0_i32, %c0_i32_0 : i32, i32, i32
  }
}

</mosaic_0001>

<llo_original>
// kernel: tpu_custom_call.1
$region0: #{tpu_custom_call.1}
  #allocation0 [shape = 'u32[]', space=smem, size = 0x4, offset = 0x4, fixed_abs, tag = 'smem constant byte address 0x4 - core index']
  #allocation1 [shape = 'u32[144,128]{1,0:T(1,128)}', space=vmem, size = 0x12000, scoped, tag = 'internal scratch']
  %s0 = inlined_call_operand.hbm [shape: f32[2,32,256], index: 0, kind: input, shape index: {}]
  %s1 = inlined_call_operand.vmem [shape: bf16[16,32], index: 1, kind: input, shape index: {}]
  %s2 = inlined_call_operand.vmem [shape: f32[8,1], index: 2, kind: input, shape index: {}]
  %s3 = inlined_call_operand.vmem [shape: bf16[8,72], index: 3, kind: input, shape index: {}]
  %s4 = inlined_call_operand.vmem [shape: bf16[8,72], index: 4, kind: input, shape index: {}]
  %s5 = inlined_call_operand.hbm [shape: f32[9,256], index: 5, kind: input, shape index: {}]
  %s6 = inlined_call_operand.hbm [shape: f32[9,256], index: 6, kind: input, shape index: {}]
  %s7 = inlined_call_operand.hbm [shape: f32[2,1,256], index: 7, kind: output, shape index: {}]
  %s8 = sld [smem:[#allocation0]]
  $region73: #{tpu_custom_call.1} parent=0
    _
  %s10 = ssub.s32 1, %s8
  %s11 = scalar_select 0, %s10, %s8
  $region1: #{tpu_custom_call.1} parent=0
    #allocation2 [shape = 'u8[65536]{0}', space=vmem, size = 0x10000, scoped, tag = 'input window, operand 0']
    #allocation3 [shape = 's32[2]{0}', space=sflag, size = 0x8, scoped, tag = 'scoped memory for tpu_custom_call.1']
    #allocation4 [shape = 's32[2]{0}', space=sflag, size = 0x8, scoped, tag = 'scoped memory for tpu_custom_call.1']
    #allocation5 [shape = 'u8[16384]{0}', space=vmem, size = 0x4000, scoped, tag = 'input window, operand 5, single buffered']
    #allocation6 [shape = 's32[1]{0}', space=sflag, size = 0x4, scoped, tag = 'scoped memory for tpu_custom_call.1']
    #allocation7 [shape = 'u8[16384]{0}', space=vmem, size = 0x4000, scoped, tag = 'input window, operand 6, single buffered']
    #allocation8 [shape = 'u8[2048]{0}', space=vmem, size = 0x800, scoped, tag = 'output window, operand 0']
    %12 = vsyncpa [#allocation3], 0
    %s13 = scalar_lea.sflag [#allocation3], 1
    %14 = vsyncpa %s13, 0
    %15 = vsyncpa [#allocation6], 0
    %16 = vsyncpa [#allocation4], 0
    %s17 = scalar_lea.sflag [#allocation4], 1
    %18 = vsyncpa %s17, 0
    loop: start=0, step=1, limit=4
    $region2: #{tpu_custom_call.1} parent=1 // loop_pre_header
      _
    $region3: #{tpu_custom_call.1} parent=1 // loop_header
      %s20 = sphi 0, %s24
      %p21 = scmp.ge.s32.totalorder %s20, 4
      %s30 = sphi 0, %s32
      %s33 = sphi 0, %s30
      %s34 = sphi 0, %s33
      %s50 = sphi 0, %s34
      %s54 = sphi 0, %s54
      %s56 = sphi 0, %s54
      %s57 = sphi 0, %s56
      %s71 = sphi 0, %s57
      %s75 = sphi 0, %s75
      %s77 = sphi 0, %s75
      %s78 = sphi 0, %s77
      %s92 = sphi 0, %s78
      %s96 = sphi 0, %s96
      %s98 = sphi 0, %s96
      %s99 = sphi 0, %s98
      %s113 = sphi 0, %s99
      %s117 = sphi 0, %s117
      %s119 = sphi 0, %s117
      %s120 = sphi 0, %s119
      %s134 = sphi 0, %s120
      %s138 = sphi 0, %s138
      %s140 = sphi 0, %s138
      %s141 = sphi 0, %s140
      %s155 = sphi 0, %s141
      %s159 = sphi 0, %s159
      %s161 = sphi 0, %s159
      %s162 = sphi 0, %s161
      %s176 = sphi 0, %s162
      %s182 = sphi 0, %s184
      %s185 = sphi 0, %s182
      %s186 = sphi 0, %s185
      %s202 = sphi 0, %s186
    $region4: #{tpu_custom_call.1} parent=1 // loop_header_branch
      %23 = sbr.rel (%p21) target = $region8
    $region5: #{tpu_custom_call.1} parent=1 // loop_body
      %s25 = ssub.s32 %s20, 1
      %s26 = ssub.s32 %s20, 2
      %s27 = sadd.s32 %s20, 1
      %s28 = ssub.s32 %s20, %s27
      %p29 = scmp.eq.s32.totalorder %s28, 0
      %s31 = sadd.s32 %s30, 1
      %s32 = scalar_select %p29, %s30, %s31
      %p35 = pneg %p29
      %p36 = scmp.eq.s32.totalorder %s20, 1
      %p37 = por %p35, %p36
      %p38 = scmp.ne.s32.totalorder %s30, %s33
      %p39 = scmp.eq.s32.totalorder %s20, 0
      %p40 = por %p38, %p39
      %p41 = scmp.ne.s32.totalorder %s30, %s33
      %p42 = scmp.eq.s32.totalorder %s25, 1
      %p43 = por %p41, %p42
      %p44 = scmp.ne.s32.totalorder %s33, %s34
      %p45 = scmp.eq.s32.totalorder %s25, 0
      %p46 = por %p44, %p45
      %p47 = scmp.ne.s32.totalorder %s33, %s34
      %p48 = scmp.eq.s32.totalorder %s26, 1
      %p49 = por %p47, %p48
      %p51 = scmp.ne.s32.totalorder %s34, %s50
      %p52 = scmp.eq.s32.totalorder %s26, 0
      %p53 = por %p51, %p52
      %s55 = sadd.s32 %s54, 1
      %p58 = scmp.eq.s32.totalorder %s20, 1
      %p59 = scmp.ne.s32.totalorder %s54, %s56
      %p60 = scmp.eq.s32.totalorder %s20, 0
      %p61 = por %p59, %p60
      %p62 = scmp.ne.s32.totalorder %s54, %s56
      %p63 = scmp.eq.s32.totalorder %s25, 1
      %p64 = por %p62, %p63
      %p65 = scmp.ne.s32.totalorder %s56, %s57
      %p66 = scmp.eq.s32.totalorder %s25, 0
      %p67 = por %p65, %p66
      %p68 = scmp.ne.s32.totalorder %s56, %s57
      %p69 = scmp.eq.s32.totalorder %s26, 1
      %p70 = por %p68, %p69
      %p72 = scmp.ne.s32.totalorder %s57, %s71
      %p73 = scmp.eq.s32.totalorder %s26, 0
      %p74 = por %p72, %p73
      %s76 = sadd.s32 %s75, 1
      %p79 = scmp.eq.s32.totalorder %s20, 1
      %p80 = scmp.ne.s32.totalorder %s75, %s77
      %p81 = scmp.eq.s32.totalorder %s20, 0
      %p82 = por %p80, %p81
      %p83 = scmp.ne.s32.totalorder %s75, %s77
      %p84 = scmp.eq.s32.totalorder %s25, 1
      %p85 = por %p83, %p84
      %p86 = scmp.ne.s32.totalorder %s77, %s78
      %p87 = scmp.eq.s32.totalorder %s25, 0
      %p88 = por %p86, %p87
      %p89 = scmp.ne.s32.totalorder %s77, %s78
      %p90 = scmp.eq.s32.totalorder %s26, 1
      %p91 = por %p89, %p90
      %p93 = scmp.ne.s32.totalorder %s78, %s92
      %p94 = scmp.eq.s32.totalorder %s26, 0
      %p95 = por %p93, %p94
      %s97 = sadd.s32 %s96, 1
      %p100 = scmp.eq.s32.totalorder %s20, 1
      %p101 = scmp.ne.s32.totalorder %s96, %s98
      %p102 = scmp.eq.s32.totalorder %s20, 0
      %p103 = por %p101, %p102
      %p104 = scmp.ne.s32.totalorder %s96, %s98
      %p105 = scmp.eq.s32.totalorder %s25, 1
      %p106 = por %p104, %p105
      %p107 = scmp.ne.s32.totalorder %s98, %s99
      %p108 = scmp.eq.s32.totalorder %s25, 0
      %p109 = por %p107, %p108
      %p110 = scmp.ne.s32.totalorder %s98, %s99
      %p111 = scmp.eq.s32.totalorder %s26, 1
      %p112 = por %p110, %p111
      %p114 = scmp.ne.s32.totalorder %s99, %s113
      %p115 = scmp.eq.s32.totalorder %s26, 0
      %p116 = por %p114, %p115
      %s118 = sadd.s32 %s117, 1
      %p121 = scmp.eq.s32.totalorder %s20, 1
      %p122 = scmp.ne.s32.totalorder %s117, %s119
      %p123 = scmp.eq.s32.totalorder %s20, 0
      %p124 = por %p122, %p123
      %p125 = scmp.ne.s32.totalorder %s117, %s119
      %p126 = scmp.eq.s32.totalorder %s25, 1
      %p127 = por %p125, %p126
      %p128 = scmp.ne.s32.totalorder %s119, %s120
      %p129 = scmp.eq.s32.totalorder %s25, 0
      %p130 = por %p128, %p129
      %p131 = scmp.ne.s32.totalorder %s119, %s120
      %p132 = scmp.eq.s32.totalorder %s26, 1
      %p133 = por %p131, %p132
      %p135 = scmp.ne.s32.totalorder %s120, %s134
      %p136 = scmp.eq.s32.totalorder %s26, 0
      %p137 = por %p135, %p136
      %s139 = sadd.s32 %s138, 1
      %p142 = scmp.eq.s32.totalorder %s20, 1
      %p143 = scmp.ne.s32.totalorder %s138, %s140
      %p144 = scmp.eq.s32.totalorder %s20, 0
      %p145 = por %p143, %p144
      %p146 = scmp.ne.s32.totalorder %s138, %s140
      %p147 = scmp.eq.s32.totalorder %s25, 1
      %p148 = por %p146, %p147
      %p149 = scmp.ne.s32.totalorder %s140, %s141
      %p150 = scmp.eq.s32.totalorder %s25, 0
      %p151 = por %p149, %p150
      %p152 = scmp.ne.s32.totalorder %s140, %s141
      %p153 = scmp.eq.s32.totalorder %s26, 1
      %p154 = por %p152, %p153
      %p156 = scmp.ne.s32.totalorder %s141, %s155
      %p157 = scmp.eq.s32.totalorder %s26, 0
      %p158 = por %p156, %p157
      %s160 = sadd.s32 %s159, 1
      %p163 = scmp.eq.s32.totalorder %s20, 1
      %p164 = scmp.ne.s32.totalorder %s159, %s161
      %p165 = scmp.eq.s32.totalorder %s20, 0
      %p166 = por %p164, %p165
      %p167 = scmp.ne.s32.totalorder %s159, %s161
      %p168 = scmp.eq.s32.totalorder %s25, 1
      %p169 = por %p167, %p168
      %p170 = scmp.ne.s32.totalorder %s161, %s162
      %p171 = scmp.eq.s32.totalorder %s25, 0
      %p172 = por %p170, %p171
      %p173 = scmp.ne.s32.totalorder %s161, %s162
      %p174 = scmp.eq.s32.totalorder %s26, 1
      %p175 = por %p173, %p174
      %p177 = scmp.ne.s32.totalorder %s162, %s176
      %p178 = scmp.eq.s32.totalorder %s26, 0
      %p179 = por %p177, %p178
      %s180 = ssub.s32 %s20, %s27
      %p181 = scmp.eq.s32.totalorder %s180, 0
      %s183 = sadd.s32 %s182, 1
      %s184 = scalar_select %p181, %s182, %s183
      %p187 = pneg %p181
      %p188 = scmp.eq.s32.totalorder %s20, 1
      %p189 = por %p187, %p188
      %p190 = scmp.ne.s32.totalorder %s182, %s185
      %p191 = scmp.eq.s32.totalorder %s20, 0
      %p192 = por %p190, %p191
      %p193 = scmp.ne.s32.totalorder %s182, %s185
      %p194 = scmp.eq.s32.totalorder %s25, 1
      %p195 = por %p193, %p194
      %p196 = scmp.ne.s32.totalorder %s185, %s186
      %p197 = scmp.eq.s32.totalorder %s25, 0
      %p198 = por %p196, %p197
      %p199 = scmp.ne.s32.totalorder %s185, %s186
      %p200 = scmp.eq.s32.totalorder %s26, 1
      %p201 = por %p199, %p200
      %p203 = scmp.ne.s32.totalorder %s186, %s202
      %p204 = scmp.eq.s32.totalorder %s26, 0
      %p205 = por %p203, %p204
      %p206 = scmp.le.s32.totalorder 1, %s20
      %p207 = scmp.lt.s32.totalorder %s20, 3
      %p208 = pnand %p206, %p207
      %p209 = pneg %p208
      // Predicated region
      $region9: #{tpu_custom_call.1} parent=5 // pred_check
        _
      $region10: #{tpu_custom_call.1} parent=5 // pred_check_branch
        %211 = sbr.rel (%p208) target = $region12
      $region11: #{tpu_custom_call.1} parent=5 // pred_region
        %s212 = ssub.s32 %s20, 1
        // Predicated region
        $region13: #{tpu_custom_call.1} parent=11 // pred_check
          %p213 = pneg %p67
        $region14: #{tpu_custom_call.1} parent=11 // pred_check_branch
          %215 = sbr.rel (%p213) target = $region16
        $region15: #{tpu_custom_call.1} parent=11 // pred_region
          _
        $region16: #{tpu_custom_call.1} parent=11 // pred_fallthru
          _
        // Predicated region
        $region17: #{tpu_custom_call.1} parent=11 // pred_check
          %p216 = pneg %p88
        $region18: #{tpu_custom_call.1} parent=11 // pred_check_branch
          %218 = sbr.rel (%p216) target = $region20
        $region19: #{tpu_custom_call.1} parent=11 // pred_region
          _
        $region20: #{tpu_custom_call.1} parent=11 // pred_fallthru
          _
        // Predicated region
        $region21: #{tpu_custom_call.1} parent=11 // pred_check
          %p219 = pneg %p109
        $region22: #{tpu_custom_call.1} parent=11 // pred_check_branch
          %221 = sbr.rel (%p219) target = $region24
        $region23: #{tpu_custom_call.1} parent=11 // pred_region
          _
        $region24: #{tpu_custom_call.1} parent=11 // pred_fallthru
          _
        // Predicated region
        $region25: #{tpu_custom_call.1} parent=11 // pred_check
          %p222 = pneg %p130
        $region26: #{tpu_custom_call.1} parent=11 // pred_check_branch
          %224 = sbr.rel (%p222) target = $region28
        $region27: #{tpu_custom_call.1} parent=11 // pred_region
          _
        $region28: #{tpu_custom_call.1} parent=11 // pred_fallthru
          _
        // Predicated region
        $region29: #{tpu_custom_call.1} parent=11 // pred_check
          %p225 = pneg %p151
        $region30: #{tpu_custom_call.1} parent=11 // pred_check_branch
          %227 = sbr.rel (%p225) target = $region32
        $region31: #{tpu_custom_call.1} parent=11 // pred_region
          %s229 = ssub.s32 512, 512
          %230 = vsyncadd [#allocation6], %s229
          %s231 = sshll.u32 [#allocation5], 4
          %s232 = int_to_ptr.vmem [resolvable:$true] %s231
          %237 = dma.hbm_to_vmem [thread:$0]  %s5, 512, %s232, [#allocation6], 256, 256, 16
        $region32: #{tpu_custom_call.1} parent=11 // pred_fallthru
          _
        // Predicated region
        $region33: #{tpu_custom_call.1} parent=11 // pred_check
          %p238 = pneg %p172
        $region34: #{tpu_custom_call.1} parent=11 // pred_check_branch
          %240 = sbr.rel (%p238) target = $region36
        $region35: #{tpu_custom_call.1} parent=11 // pred_region
          %s242 = ssub.s32 512, 512
          %243 = vsyncadd [#allocation6], %s242
          %s244 = sshll.u32 [#allocation7], 4
          %s245 = int_to_ptr.vmem [resolvable:$true] %s244
          %250 = dma.hbm_to_vmem [thread:$0]  %s6, 512, %s245, [#allocation6], 256, 256, 16
        $region36: #{tpu_custom_call.1} parent=11 // pred_fallthru
          _
      $region12: #{tpu_custom_call.1} parent=5 // pred_fallthru
        _
      %p251 = scmp.lt.s32.totalorder %s20, 2
      // Predicated region
      $region37: #{tpu_custom_call.1} parent=5 // pred_check
        %p252 = pneg %p251
      $region38: #{tpu_custom_call.1} parent=5 // pred_check_branch
        %254 = sbr.rel (%p252) target = $region40
      $region39: #{tpu_custom_call.1} parent=5 // pred_region
        // Predicated region
        $region41: #{tpu_custom_call.1} parent=39 // pred_check
          %p255 = pneg %p40
        $region42: #{tpu_custom_call.1} parent=39 // pred_check_branch
          %257 = sbr.rel (%p255) target = $region44
        $region43: #{tpu_custom_call.1} parent=39 // pred_region
          %s258 = sand.u32 %s30, 1
          %s259 = scalar_lea.sflag [#allocation3], %s258
          %s260 = sand.u32 %s30, 1
          %s261 = smul.addr %s260, 64
          %s262 = scalar_lea.vmem [#allocation2], %s261
          %s264 = ssub.s32 1024, 1024
          %265 = vsyncadd %s259, %s264
          %s266 = smul.addr %s20, 8
          %s267 = smul.addr %s266, 128
          %s268 = scalar_lea.hbm %s0, %s267
          %s269 = sshll.u32 %s262, 4
          %s270 = int_to_ptr.vmem [resolvable:$true] %s269
          %275 = dma.hbm_to_vmem [thread:$0]  %s268, 1024, %s270, %s259, 256, 256, 16
        $region44: #{tpu_custom_call.1} parent=39 // pred_fallthru
          _
      $region40: #{tpu_custom_call.1} parent=5 // pred_fallthru
        _
      %p276 = scmp.le.s32.totalorder 1, %s20
      %p277 = scmp.lt.s32.totalorder %s20, 3
      %p278 = pnand %p276, %p277
      %p279 = pneg %p278
      // Predicated region
      $region45: #{tpu_custom_call.1} parent=5 // pred_check
        _
      $region46: #{tpu_custom_call.1} parent=5 // pred_check_branch
        %281 = sbr.rel (%p278) target = $region48
      $region47: #{tpu_custom_call.1} parent=5 // pred_region
        %s282 = ssub.s32 %s20, 1
        %s283 = sand.u32 %s33, 1
        %s284 = scalar_lea.sflag [#allocation3], %s283
        %s285 = sand.u32 %s33, 1
        %s286 = smul.addr %s285, 64
        %s287 = scalar_lea.vmem [#allocation2], %s286
        // Predicated region
        $region49: #{tpu_custom_call.1} parent=47 // pred_check
          %p288 = pneg %p46
        $region50: #{tpu_custom_call.1} parent=47 // pred_check_branch
          %290 = sbr.rel (%p288) target = $region52
        $region51: #{tpu_custom_call.1} parent=47 // pred_region
          %291 = dma.done %s284, 1024
        $region52: #{tpu_custom_call.1} parent=47 // pred_fallthru
          _
        // Predicated region
        $region53: #{tpu_custom_call.1} parent=47 // pred_check
          %p292 = pneg %p151
        $region54: #{tpu_custom_call.1} parent=47 // pred_check_branch
          %294 = sbr.rel (%p292) target = $region56
        $region55: #{tpu_custom_call.1} parent=47 // pred_region
          %295 = dma.done [#allocation6], 512
        $region56: #{tpu_custom_call.1} parent=47 // pred_fallthru
          _
        // Predicated region
        $region57: #{tpu_custom_call.1} parent=47 // pred_check
          %p296 = pneg %p172
        $region58: #{tpu_custom_call.1} parent=47 // pred_check_branch
          %298 = sbr.rel (%p296) target = $region60
        $region59: #{tpu_custom_call.1} parent=47 // pred_region
          %299 = dma.done [#allocation6], 512
        $region60: #{tpu_custom_call.1} parent=47 // pred_fallthru
          _
        %s300 = sand.u32 %s33, 1
        %s301 = scalar_lea.sflag [#allocation3], %s300
        %s302 = sand.u32 %s33, 1
        %s303 = smul.addr %s302, 64
        %s304 = scalar_lea.vmem [#allocation2], %s303
        %p305 = pneg %p46
        %p306 = pneg %p43
        %p307 = pneg %p67
        %p308 = pneg %p64
        %p309 = pneg %p88
        %p310 = pneg %p85
        %p311 = pneg %p109
        %p312 = pneg %p106
        %p313 = pneg %p130
        %p314 = pneg %p127
        %p315 = pneg %p151
        %p316 = pneg %p148
        %p317 = pneg %p172
        %p318 = pneg %p169
        %p319 = pneg %p198
        %p320 = pneg %p195
        %s321 = sand.u32 %s185, 1
        %s322 = scalar_lea.sflag [#allocation4], %s321
        %s323 = sand.u32 %s185, 1
        %s324 = smul.addr %s323, 2
        %s325 = scalar_lea.vmem [#allocation8], %s324
        %v327 = vld [vmem:[%s287] sm:$0xff]
        %v328 = vld [vmem:[%s287 + $0x8] sm:$0xff]
        %v329 = vld [vmem:[%s287 + $0x10] sm:$0xff]
        %v330 = vld [vmem:[%s287 + $0x18] sm:$0xff]
        %v331 = vld [vmem:[%s287 + $0x20] sm:$0xff]
        %v332 = vld [vmem:[%s287 + $0x28] sm:$0xff]
        %v333 = vld [vmem:[%s287 + $0x30] sm:$0xff]
        %v334 = vld [vmem:[%s287 + $0x38] sm:$0xff]
        %v335 = vpack.c.bf16 %v329, %v327
        %v336 = vpack.c.bf16 %v330, %v328
        %v337 = vpack.c.bf16 %v333, %v331
        %v338 = vpack.c.bf16 %v334, %v332
        %v339 = vld [vmem:[%s1] sm:$0xf]
        %v340 = vld [vmem:[%s1 + $0x4] sm:$0xf]
        %v343 = vunpack.c.l.b16 %v339
        %v344 = vunpack.c.l.b16 %v340
        %v345 = vpack.c.b16 %v344, %v343
        %vm346 = vcmask 261120
        %v348 = vsel %vm346, %v345, 0
        %350 = vmatprep.subr.bf16.mxu0 0
        %351 = vmatpush1.bf16.msra.mxu0 0
        %352 = vmatprep.subr.bf16.mxu0 0
        %353 = vmatpush1.bf16.msra.mxu0 0
        %354 = vmatprep.subr.bf16.mxu0 0
        %355 = vmatpush1.bf16.msra.mxu0 0
        %356 = vmatprep.subr.bf16.mxu0 0
        %357 = vmatpush1.bf16.msra.mxu0 0
        %358 = vmatprep.subr.bf16.mxu0 0
        %359 = vmatpush1.bf16.msra.mxu0 0
        %360 = vmatprep.subr.bf16.mxu0 0
        %361 = vmatpush1.bf16.msra.mxu0 0
        %362 = vmatprep.subr.bf16.mxu0 %v338
        %363 = vmatpush1.bf16.msra.mxu0 %v337
        %364 = vmatprep.subr.bf16.mxu0 %v336
        %365 = vmatpush1.bf16.msra.mxu0 %v335
        %366 = vmatprep.subr.bf16.mxu0 0
        %367 = vmatpush2.bf16.msra.mxu0 0
        %368 = vmatprep.subr.bf16.mxu0 0
        %369 = vmatpush2.bf16.msra.mxu0 0
        %370 = vmatprep.subr.bf16.mxu0 0
        %371 = vmatpush2.bf16.msra.mxu0 0
        %372 = vmatprep.subr.bf16.mxu0 0
        %373 = vmatpush2.bf16.msra.mxu0 0
        %374 = vmatprep.subr.bf16.mxu0 0
        %375 = vmatpush2.bf16.msra.mxu0 0
        %376 = vmatprep.subr.bf16.mxu0 0
        %377 = vmatpush2.bf16.msra.mxu0 0
        %378 = vmatprep.subr.bf16.mxu0 0
        %379 = vmatpush2.bf16.msra.mxu0 0
        %380 = vmatprep.subr.bf16.mxu0 0
        %381 = vmatpush2.bf16.msra.mxu0 0
        %382 = vmatprep.mubr.bf16.mxu0 0
        %383 = vmatmul.mubr.bf16.gmra.mxu0 %v348
        %v384 = vpop.f32.mrf.mxu0
        %v385 = vadd.f32 0.0, %v384
        %v386 = vpop.f32.mrf.mxu0
        %v387 = vadd.f32 0.0, %v386
        %v388 = vpop.f32.mrf.mxu0
        %v389 = vadd.f32 0.0, %v388
        %v390 = vpop.f32.mrf.mxu0
        %v391 = vadd.f32 0.0, %v390
        %392 = vdwg.mxu0
        %v393 = vld [vmem:[#allocation5] sm:$0xff]
        %v394 = vld [vmem:[#allocation5 + $0x8] sm:$0xff]
        %v395 = vld [vmem:[#allocation5 + $0x10] sm:$0x1]
        %v396 = vld [vmem:[#allocation5 + $0x18] sm:$0x1]
        %397 = vrot.lane.b32.xlu0 %v385, 17
        %v398 = vpop.permute.xlu0 %397
        %399 = vrot.lane.b32.xlu0 %v387, 17
        %v400 = vpop.permute.xlu0 %399
        %v401 = vlaneseq
        %v402 = vand.u32 %v401, 127
        %vm403 = vcmp.lt.s32.totalorder %v402, 17
        %v404 = vsel %vm403, %v398, %v400
        %v405 = vsel %vm403, %v400, %v398
        %v406 = vlaneseq
        %v407 = vshrl.u32 %v406, 7
        %v408 = vsub.s32 0, %v407
        %v409 = vrot.slane %v393, %v408
        %v410 = vlaneseq
        %v411 = vshrl.u32 %v410, 7
        %v412 = vsub.s32 0, %v411
        %v413 = vrot.slane %v394, %v412
        %v414 = vmul.f32 %v405, %v409
        %v415 = vmul.f32 %v404, %v413
        %416 = vrot.lane.b32.xlu0 %v385, 16
        %v417 = vpop.permute.xlu0 %416
        %418 = vrot.lane.b32.xlu0 %v387, 16
        %v419 = vpop.permute.xlu0 %418
        %vm420 = vcmp.lt.s32.totalorder %v402, 16
        %v421 = vsel %vm420, %v417, %v419
        %v422 = vsel %vm420, %v419, %v417
        %v423 = vlaneseq
        %v424 = vshrl.u32 %v423, 7
        %v425 = vsub.s32 1, %v424
        %v426 = vrot.slane %v393, %v425
        %v427 = vlaneseq
        %v428 = vshrl.u32 %v427, 7
        %v429 = vsub.s32 1, %v428
        %v430 = vrot.slane %v394, %v429
        %v431 = vmul.f32 %v422, %v426
        %v432 = vmul.f32 %v421, %v430
        %433 = vrot.lane.b32.xlu0 %v385, 15
        %v434 = vpop.permute.xlu0 %433
        %435 = vrot.lane.b32.xlu0 %v387, 15
        %v436 = vpop.permute.xlu0 %435
        %vm437 = vcmp.lt.s32.totalorder %v402, 15
        %v438 = vsel %vm437, %v434, %v436
        %v439 = vsel %vm437, %v436, %v434
        %v440 = vlaneseq
        %v441 = vshrl.u32 %v440, 7
        %v442 = vsub.s32 2, %v441
        %v443 = vrot.slane %v393, %v442
        %v444 = vlaneseq
        %v445 = vshrl.u32 %v444, 7
        %v446 = vsub.s32 2, %v445
        %v447 = vrot.slane %v394, %v446
        %v448 = vmul.f32 %v439, %v443
        %v449 = vmul.f32 %v438, %v447
        %450 = vrot.lane.b32.xlu0 %v385, 1
        %v451 = vpop.permute.xlu0 %450
        %452 = vrot.lane.b32.xlu0 %v387, 1
        %v453 = vpop.permute.xlu0 %452
        %vm454 = vcmp.lt.s32.totalorder %v402, 1
        %v455 = vsel %vm454, %v451, %v453
        %v456 = vsel %vm454, %v453, %v451
        %v457 = vlaneseq
        %v458 = vshrl.u32 %v457, 7
        %v459 = vsub.s32 3, %v458
        %v460 = vrot.slane %v393, %v459
        %v461 = vlaneseq
        %v462 = vshrl.u32 %v461, 7
        %v463 = vsub.s32 3, %v462
        %v464 = vrot.slane %v394, %v463
        %v465 = vmul.f32 %v456, %v460
        %v466 = vmul.f32 %v455, %v464
        %v467 = vlaneseq
        %v468 = vshrl.u32 %v467, 7
        %v469 = vsub.s32 4, %v468
        %v470 = vrot.slane %v393, %v469
        %v471 = vlaneseq
        %v472 = vshrl.u32 %v471, 7
        %v473 = vsub.s32 4, %v472
        %v474 = vrot.slane %v394, %v473
        %v475 = vmul.f32 %v385, %v470
        %v476 = vmul.f32 %v387, %v474
        %477 = vrot.lane.b32.xlu0 %v385, 127
        %v478 = vpop.permute.xlu0 %477
        %479 = vrot.lane.b32.xlu0 %v387, 127
        %v480 = vpop.permute.xlu0 %479
        %vm481 = vcmp.lt.s32.totalorder %v402, 127
        %v482 = vsel %vm481, %v478, %v480
        %v483 = vsel %vm481, %v480, %v478
        %v484 = vlaneseq
        %v485 = vshrl.u32 %v484, 7
        %v486 = vsub.s32 5, %v485
        %v487 = vrot.slane %v393, %v486
        %v488 = vlaneseq
        %v489 = vshrl.u32 %v488, 7
        %v490 = vsub.s32 5, %v489
        %v491 = vrot.slane %v394, %v490
        %v492 = vmul.f32 %v482, %v487
        %v493 = vmul.f32 %v483, %v491
        %494 = vrot.lane.b32.xlu0 %v385, 113
        %v495 = vpop.permute.xlu0 %494
        %496 = vrot.lane.b32.xlu0 %v387, 113
        %v497 = vpop.permute.xlu0 %496
        %vm498 = vcmp.lt.s32.totalorder %v402, 113
        %v499 = vsel %vm498, %v495, %v497
        %v500 = vsel %vm498, %v497, %v495
        %v501 = vlaneseq
        %v502 = vshrl.u32 %v501, 7
        %v503 = vsub.s32 6, %v502
        %v504 = vrot.slane %v393, %v503
        %v505 = vlaneseq
        %v506 = vshrl.u32 %v505, 7
        %v507 = vsub.s32 6, %v506
        %v508 = vrot.slane %v394, %v507
        %v509 = vmul.f32 %v499, %v504
        %v510 = vmul.f32 %v500, %v508
        %511 = vrot.lane.b32.xlu0 %v385, 112
        %v512 = vpop.permute.xlu0 %511
        %513 = vrot.lane.b32.xlu0 %v387, 112
        %v514 = vpop.permute.xlu0 %513
        %vm515 = vcmp.lt.s32.totalorder %v402, 112
        %v516 = vsel %vm515, %v512, %v514
        %v517 = vsel %vm515, %v514, %v512
        %v518 = vlaneseq
        %v519 = vshrl.u32 %v518, 7
        %v520 = vsub.s32 7, %v519
        %v521 = vrot.slane %v393, %v520
        %v522 = vlaneseq
        %v523 = vshrl.u32 %v522, 7
        %v524 = vsub.s32 7, %v523
        %v525 = vrot.slane %v394, %v524
        %v526 = vmul.f32 %v516, %v521
        %v527 = vmul.f32 %v517, %v525
        %528 = vrot.lane.b32.xlu0 %v385, 111
        %v529 = vpop.permute.xlu0 %528
        %530 = vrot.lane.b32.xlu0 %v387, 111
        %v531 = vpop.permute.xlu0 %530
        %vm532 = vcmp.lt.s32.totalorder %v402, 111
        %v533 = vsel %vm532, %v529, %v531
        %v534 = vsel %vm532, %v531, %v529
        %v535 = vlaneseq
        %v536 = vshrl.u32 %v535, 7
        %v537 = vsub.s32 0, %v536
        %v538 = vrot.slane %v395, %v537
        %v539 = vlaneseq
        %v540 = vshrl.u32 %v539, 7
        %v541 = vsub.s32 0, %v540
        %v542 = vrot.slane %v396, %v541
        %v543 = vmul.f32 %v533, %v538
        %v544 = vmul.f32 %v534, %v542
        %v545 = vpack.c.bf16 %v431, %v414
        %v546 = vpack.c.bf16 %v432, %v415
        %v547 = vpack.c.bf16 %v465, %v448
        %v548 = vpack.c.bf16 %v466, %v449
        %v549 = vpack.c.bf16 %v492, %v475
        %v550 = vpack.c.bf16 %v493, %v476
        %v551 = vpack.c.bf16 %v526, %v509
        %v552 = vpack.c.bf16 %v527, %v510
        %v553 = vpack.c.bf16 %v543, %v543
        %v554 = vpack.c.bf16 %v544, %v544
        %v555 = vld [vmem:[%s3] sm:$0xf]
        %vm556 = vcmask 588800
        %v558 = vsel %vm556, %v555, 0
        %vm560 = vcmask 1043456
        %v562 = vsel %vm560, %v553, 0
        %v565 = vsel %vm560, %v554, 0
        %567 = vmatprep.subr.bf16.mxu0 0
        %568 = vmatpush1.bf16.msra.mxu0 0
        %569 = vmatprep.subr.bf16.mxu0 0
        %570 = vmatpush1.bf16.msra.mxu0 0
        %571 = vmatprep.subr.bf16.mxu0 0
        %572 = vmatpush1.bf16.msra.mxu0 0
        %573 = vmatprep.subr.bf16.mxu0 %v565
        %574 = vmatpush1.bf16.msra.mxu0 %v562
        %575 = vmatprep.subr.bf16.mxu0 %v552
        %576 = vmatpush1.bf16.msra.mxu0 %v551
        %577 = vmatprep.subr.bf16.mxu0 %v550
        %578 = vmatpush1.bf16.msra.mxu0 %v549
        %579 = vmatprep.subr.bf16.mxu0 %v548
        %580 = vmatpush1.bf16.msra.mxu0 %v547
        %581 = vmatprep.subr.bf16.mxu0 %v546
        %582 = vmatpush1.bf16.msra.mxu0 %v545
        %583 = vmatprep.subr.bf16.mxu0 0
        %584 = vmatpush2.bf16.msra.mxu0 0
        %585 = vmatprep.subr.bf16.mxu0 0
        %586 = vmatpush2.bf16.msra.mxu0 0
        %587 = vmatprep.subr.bf16.mxu0 0
        %588 = vmatpush2.bf16.msra.mxu0 0
        %589 = vmatprep.subr.bf16.mxu0 0
        %590 = vmatpush2.bf16.msra.mxu0 0
        %591 = vmatprep.subr.bf16.mxu0 0
        %592 = vmatpush2.bf16.msra.mxu0 0
        %593 = vmatprep.subr.bf16.mxu0 0
        %594 = vmatpush2.bf16.msra.mxu0 0
        %595 = vmatprep.subr.bf16.mxu0 0
        %596 = vmatpush2.bf16.msra.mxu0 0
        %597 = vmatprep.subr.bf16.mxu0 0
        %598 = vmatpush2.bf16.msra.mxu0 0
        %599 = vmatprep.mubr.bf16.mxu0 0
        %600 = vmatmul.mubr.bf16.gmra.mxu0 %v558
        %v601 = vpop.f32.mrf.mxu0
        %v602 = vadd.f32 0.0, %v601
        %v603 = vpop.f32.mrf.mxu0
        %v604 = vadd.f32 0.0, %v603
        %v605 = vpop.f32.mrf.mxu0
        %v606 = vpop.f32.mrf.mxu0
        %607 = vdwg.mxu0
        %v608 = vmul.f32 %v602, 0.5
        %v609 = vmul.f32 %v604, 0.5
        %v610 = vmul.f32 %v602, %v602
        %v611 = vmul.f32 %v604, %v604
        %v612 = vmul.f32 %v610, %v602
        %v613 = vmul.f32 %v611, %v604
        %v614 = vmul.f32 %v612, 0.044715
        %v615 = vmul.f32 %v613, 0.044715
        %v616 = vadd.f32 %v602, %v614
        %v617 = vadd.f32 %v604, %v615
        %v618 = vmul.f32 %v616, 0.7978846
        %v619 = vmul.f32 %v617, 0.7978846
        %v620 = vtanh.pop %v618
        %v621 = vtanh.pop %v619
        %v622 = vadd.f32 %v620, 1.0
        %v623 = vadd.f32 %v621, 1.0
        %v624 = vmul.f32 %v608, %v622
        %v625 = vmul.f32 %v609, %v623
        %v626 = vlaneseq
        %v627 = vshrl.u32 %v626, 7
        %v628 = vsub.s32 0, %v627
        %v629 = vrot.slane %v389, %v628
        %v630 = vlaneseq
        %v631 = vshrl.u32 %v630, 7
        %v632 = vsub.s32 0, %v631
        %v633 = vrot.slane %v391, %v632
        %v634 = vmul.f32 %v624, %v629
        %v635 = vmul.f32 %v625, %v633
        %v636 = vadd.f32 %v634, 0.0
        %v637 = vadd.f32 %v635, 0.0
        %v638 = vld [vmem:[#allocation7] sm:$0xff]
        %v639 = vld [vmem:[#allocation7 + $0x8] sm:$0xff]
        %v640 = vld [vmem:[#allocation7 + $0x10] sm:$0x1]
        %v641 = vld [vmem:[#allocation7 + $0x18] sm:$0x1]
        %642 = vrot.lane.b32.xlu0 %v624, 17
        %v643 = vpop.permute.xlu0 %642
        %644 = vrot.lane.b32.xlu0 %v625, 17
        %v645 = vpop.permute.xlu0 %644
        %v646 = vsel %vm403, %v643, %v645
        %v647 = vsel %vm403, %v645, %v643
        %v648 = vlaneseq
        %v649 = vshrl.u32 %v648, 7
        %v650 = vsub.s32 0, %v649
        %v651 = vrot.slane %v638, %v650
        %v652 = vlaneseq
        %v653 = vshrl.u32 %v652, 7
        %v654 = vsub.s32 0, %v653
        %v655 = vrot.slane %v639, %v654
        %v656 = vmul.f32 %v647, %v651
        %v657 = vmul.f32 %v646, %v655
        %658 = vrot.lane.b32.xlu0 %v624, 16
        %v659 = vpop.permute.xlu0 %658
        %660 = vrot.lane.b32.xlu0 %v625, 16
        %v661 = vpop.permute.xlu0 %660
        %v662 = vsel %vm420, %v659, %v661
        %v663 = vsel %vm420, %v661, %v659
        %v664 = vlaneseq
        %v665 = vshrl.u32 %v664, 7
        %v666 = vsub.s32 1, %v665
        %v667 = vrot.slane %v638, %v666
        %v668 = vlaneseq
        %v669 = vshrl.u32 %v668, 7
        %v670 = vsub.s32 1, %v669
        %v671 = vrot.slane %v639, %v670
        %v672 = vmul.f32 %v663, %v667
        %v673 = vmul.f32 %v662, %v671
        %674 = vrot.lane.b32.xlu0 %v624, 15
        %v675 = vpop.permute.xlu0 %674
        %676 = vrot.lane.b32.xlu0 %v625, 15
        %v677 = vpop.permute.xlu0 %676
        %v678 = vsel %vm437, %v675, %v677
        %v679 = vsel %vm437, %v677, %v675
        %v680 = vlaneseq
        %v681 = vshrl.u32 %v680, 7
        %v682 = vsub.s32 2, %v681
        %v683 = vrot.slane %v638, %v682
        %v684 = vlaneseq
        %v685 = vshrl.u32 %v684, 7
        %v686 = vsub.s32 2, %v685
        %v687 = vrot.slane %v639, %v686
        %v688 = vmul.f32 %v679, %v683
        %v689 = vmul.f32 %v678, %v687
        %690 = vrot.lane.b32.xlu0 %v624, 1
        %v691 = vpop.permute.xlu0 %690
        %692 = vrot.lane.b32.xlu0 %v625, 1
        %v693 = vpop.permute.xlu0 %692
        %v694 = vsel %vm454, %v691, %v693
        %v695 = vsel %vm454, %v693, %v691
        %v696 = vlaneseq
        %v697 = vshrl.u32 %v696, 7
        %v698 = vsub.s32 3, %v697
        %v699 = vrot.slane %v638, %v698
        %v700 = vlaneseq
        %v701 = vshrl.u32 %v700, 7
        %v702 = vsub.s32 3, %v701
        %v703 = vrot.slane %v639, %v702
        %v704 = vmul.f32 %v695, %v699
        %v705 = vmul.f32 %v694, %v703
        %v706 = vlaneseq
        %v707 = vshrl.u32 %v706, 7
        %v708 = vsub.s32 4, %v707
        %v709 = vrot.slane %v638, %v708
        %v710 = vlaneseq
        %v711 = vshrl.u32 %v710, 7
        %v712 = vsub.s32 4, %v711
        %v713 = vrot.slane %v639, %v712
        %v714 = vmul.f32 %v624, %v709
        %v715 = vmul.f32 %v625, %v713
        %716 = vrot.lane.b32.xlu0 %v624, 127
        %v717 = vpop.permute.xlu0 %716
        %718 = vrot.lane.b32.xlu0 %v625, 127
        %v719 = vpop.permute.xlu0 %718
        %v720 = vsel %vm481, %v717, %v719
        %v721 = vsel %vm481, %v719, %v717
        %v722 = vlaneseq
        %v723 = vshrl.u32 %v722, 7
        %v724 = vsub.s32 5, %v723
        %v725 = vrot.slane %v638, %v724
        %v726 = vlaneseq
        %v727 = vshrl.u32 %v726, 7
        %v728 = vsub.s32 5, %v727
        %v729 = vrot.slane %v639, %v728
        %v730 = vmul.f32 %v720, %v725
        %v731 = vmul.f32 %v721, %v729
        %732 = vrot.lane.b32.xlu0 %v624, 113
        %v733 = vpop.permute.xlu0 %732
        %734 = vrot.lane.b32.xlu0 %v625, 113
        %v735 = vpop.permute.xlu0 %734
        %v736 = vsel %vm498, %v733, %v735
        %v737 = vsel %vm498, %v735, %v733
        %v738 = vlaneseq
        %v739 = vshrl.u32 %v738, 7
        %v740 = vsub.s32 6, %v739
        %v741 = vrot.slane %v638, %v740
        %v742 = vlaneseq
        %v743 = vshrl.u32 %v742, 7
        %v744 = vsub.s32 6, %v743
        %v745 = vrot.slane %v639, %v744
        %v746 = vmul.f32 %v736, %v741
        %v747 = vmul.f32 %v737, %v745
        %748 = vrot.lane.b32.xlu0 %v624, 112
        %v749 = vpop.permute.xlu0 %748
        %750 = vrot.lane.b32.xlu0 %v625, 112
        %v751 = vpop.permute.xlu0 %750
        %v752 = vsel %vm515, %v749, %v751
        %v753 = vsel %vm515, %v751, %v749
        %v754 = vlaneseq
        %v755 = vshrl.u32 %v754, 7
        %v756 = vsub.s32 7, %v755
        %v757 = vrot.slane %v638, %v756
        %v758 = vlaneseq
        %v759 = vshrl.u32 %v758, 7
        %v760 = vsub.s32 7, %v759
        %v761 = vrot.slane %v639, %v760
        %v762 = vmul.f32 %v752, %v757
        %v763 = vmul.f32 %v753, %v761
        %764 = vrot.lane.b32.xlu0 %v624, 111
        %v765 = vpop.permute.xlu0 %764
        %766 = vrot.lane.b32.xlu0 %v625, 111
        %v767 = vpop.permute.xlu0 %766
        %v768 = vsel %vm532, %v765, %v767
        %v769 = vsel %vm532, %v767, %v765
        %v770 = vlaneseq
        %v771 = vshrl.u32 %v770, 7
        %v772 = vsub.s32 0, %v771
        %v773 = vrot.slane %v640, %v772
        %v774 = vlaneseq
        %v775 = vshrl.u32 %v774, 7
        %v776 = vsub.s32 0, %v775
        %v777 = vrot.slane %v641, %v776
        %v778 = vmul.f32 %v768, %v773
        %v779 = vmul.f32 %v769, %v777
        %v780 = vpack.c.bf16 %v672, %v656
        %v781 = vpack.c.bf16 %v673, %v657
        %v782 = vpack.c.bf16 %v704, %v688
        %v783 = vpack.c.bf16 %v705, %v689
        %v784 = vpack.c.bf16 %v730, %v714
        %v785 = vpack.c.bf16 %v731, %v715
        %v786 = vpack.c.bf16 %v762, %v746
        %v787 = vpack.c.bf16 %v763, %v747
        %v788 = vpack.c.bf16 %v778, %v778
        %v789 = vpack.c.bf16 %v779, %v779
        %v790 = vld [vmem:[%s4] sm:$0xf]
        %v792 = vsel %vm556, %v790, 0
        %v795 = vsel %vm560, %v788, 0
        %v798 = vsel %vm560, %v789, 0
        %800 = vmatprep.subr.bf16.mxu0 0
        %801 = vmatpush1.bf16.msra.mxu0 0
        %802 = vmatprep.subr.bf16.mxu0 0
        %803 = vmatpush1.bf16.msra.mxu0 0
        %804 = vmatprep.subr.bf16.mxu0 0
        %805 = vmatpush1.bf16.msra.mxu0 0
        %806 = vmatprep.subr.bf16.mxu0 %v798
        %807 = vmatpush1.bf16.msra.mxu0 %v795
        %808 = vmatprep.subr.bf16.mxu0 %v787
        %809 = vmatpush1.bf16.msra.mxu0 %v786
        %810 = vmatprep.subr.bf16.mxu0 %v785
        %811 = vmatpush1.bf16.msra.mxu0 %v784
        %812 = vmatprep.subr.bf16.mxu0 %v783
        %813 = vmatpush1.bf16.msra.mxu0 %v782
        %814 = vmatprep.subr.bf16.mxu0 %v781
        %815 = vmatpush1.bf16.msra.mxu0 %v780
        %816 = vmatprep.subr.bf16.mxu0 0
        %817 = vmatpush2.bf16.msra.mxu0 0
        %818 = vmatprep.subr.bf16.mxu0 0
        %819 = vmatpush2.bf16.msra.mxu0 0
        %820 = vmatprep.subr.bf16.mxu0 0
        %821 = vmatpush2.bf16.msra.mxu0 0
        %822 = vmatprep.subr.bf16.mxu0 0
        %823 = vmatpush2.bf16.msra.mxu0 0
        %824 = vmatprep.subr.bf16.mxu0 0
        %825 = vmatpush2.bf16.msra.mxu0 0
        %826 = vmatprep.subr.bf16.mxu0 0
        %827 = vmatpush2.bf16.msra.mxu0 0
        %828 = vmatprep.subr.bf16.mxu0 0
        %829 = vmatpush2.bf16.msra.mxu0 0
        %830 = vmatprep.subr.bf16.mxu0 0
        %831 = vmatpush2.bf16.msra.mxu0 0
        %832 = vmatprep.mubr.bf16.mxu0 0
        %833 = vmatmul.mubr.bf16.gmra.mxu0 %v792
        %v834 = vpop.f32.mrf.mxu0
        %v835 = vadd.f32 0.0, %v834
        %v836 = vpop.f32.mrf.mxu0
        %v837 = vadd.f32 0.0, %v836
        %v838 = vpop.f32.mrf.mxu0
        %v839 = vpop.f32.mrf.mxu0
        %840 = vdwg.mxu0
        %v841 = vmul.f32 %v835, 0.5
        %v842 = vmul.f32 %v837, 0.5
        %v843 = vmul.f32 %v835, %v835
        %v844 = vmul.f32 %v837, %v837
        %v845 = vmul.f32 %v843, %v835
        %v846 = vmul.f32 %v844, %v837
        %v847 = vmul.f32 %v845, 0.044715
        %v848 = vmul.f32 %v846, 0.044715
        %v849 = vadd.f32 %v835, %v847
        %v850 = vadd.f32 %v837, %v848
        %v851 = vmul.f32 %v849, 0.7978846
        %v852 = vmul.f32 %v850, 0.7978846
        %v853 = vtanh.pop %v851
        %v854 = vtanh.pop %v852
        %v855 = vadd.f32 %v853, 1.0
        %v856 = vadd.f32 %v854, 1.0
        %v857 = vmul.f32 %v841, %v855
        %v858 = vmul.f32 %v842, %v856
        %v859 = vlaneseq
        %v860 = vshrl.u32 %v859, 7
        %v861 = vsub.s32 1, %v860
        %v862 = vrot.slane %v389, %v861
        %v863 = vlaneseq
        %v864 = vshrl.u32 %v863, 7
        %v865 = vsub.s32 1, %v864
        %v866 = vrot.slane %v391, %v865
        %v867 = vmul.f32 %v857, %v862
        %v868 = vmul.f32 %v858, %v866
        %v869 = vadd.f32 %v636, %v867
        %v870 = vadd.f32 %v637, %v868
        %v871 = vadd.f32 %v857, %v858
        %872 = vadd.xlane.f32.xlu0 %v871
        %v873 = vpop.xlane.xlu0 %872
        %v874 = vmul.f32 %v873, 0.00390625
        %v875 = vmul.f32 %v874, 0.5
        %v876 = vmul.f32 %v874, %v874
        %v877 = vmul.f32 %v876, %v874
        %v878 = vmul.f32 %v877, 0.044715
        %v879 = vadd.f32 %v874, %v878
        %v880 = vmul.f32 %v879, 0.7978846
        %v881 = vtanh.pop %v880
        %v882 = vadd.f32 %v881, 1.0
        %v883 = vmul.f32 %v875, %v882
        %v884 = vlaneseq
        %v885 = vshrl.u32 %v884, 7
        %v886 = vsub.s32 2, %v885
        %v887 = vrot.slane %v389, %v886
        %v888 = vlaneseq
        %v889 = vshrl.u32 %v888, 7
        %v890 = vsub.s32 2, %v889
        %v891 = vrot.slane %v391, %v890
        %v892 = vmul.f32 %v883, %v887
        %v893 = vmul.f32 %v883, %v891
        %v894 = vadd.f32 %v869, %v892
        %v895 = vadd.f32 %v870, %v893
        %v896 = vmul.f32 %v894, 0.33333334
        %v897 = vmul.f32 %v895, 0.33333334
        %v898 = vld [vmem:[%s2] sm:$0xff]
        %900 = vset.pattern.permute.xlu0 0
        %901 = vperm.xlu0 %900, %v898
        %v902 = vpop.permute.xlu0 %901
        %v904 = vmul.f32 %v896, %v902
        %v905 = vmul.f32 %v897, %v902
        %v906 = vrot.slane %v904, 4
        %v907 = vadd.f32 %v904, %v906
        %v908 = vrot.slane %v907, 2
        %v909 = vadd.f32 %v907, %v908
        %v910 = vrot.slane %v909, 1
        %v911 = vadd.f32 %v909, %v910
        %v912 = vrot.slane %v905, 4
        %v913 = vadd.f32 %v905, %v912
        %v914 = vrot.slane %v913, 2
        %v915 = vadd.f32 %v913, %v914
        %v916 = vrot.slane %v915, 1
        %v917 = vadd.f32 %v915, %v916
        %v918 = vxor.u32 %v911, 2147483648
        %v919 = vxor.u32 %v917, 2147483648
        %v920 = vmul.f32 %v918, 1.442695
        %v921 = vpow.pop %v920
        %v922 = vmul.f32 %v919, 1.442695
        %v923 = vpow.pop %v922
        %v924 = vadd.f32 %v921, 1.0
        %v925 = vadd.f32 %v923, 1.0
        %v926 = vrcp.pop %v924
        %v927 = vmul.f32 1.0, %v926
        %v928 = vrcp.pop %v925
        %v929 = vmul.f32 1.0, %v928
        %v932 = vcombine.low %v927, %v929
        %v934 = vunpack.c.l.s4 1966171168
        %v935 = vunpack.c.0.s8 %v934
        %v936 = vlaneseq
        %v937 = vshrl.u32 %v936, 7
        %v938 = vsub.s32 %v935, %v937
        %v939 = vrot.slane %v932, %v938
        %v941 = vunpack.c.l.s4 1966171168
        %v942 = vunpack.c.0.s8 %v941
        %v943 = vlaneseq
        %v944 = vshrl.u32 %v943, 7
        %v945 = vsub.s32 %v942, %v944
        %v946 = vrot.slane %v939, %v945
        %v948 = vlaneseq
        %vm949 = vcmp.ge.s32.totalorder %v948, 0
        %vm950 = vcmp.lt.s32.totalorder %v948, 256
        %vm951 = vmand %vm949, %vm950
        %952 = vst.msk [vmem:[%s325] sm:$0x3] %vm951, %v946
        %s953 = sand.u32 %s185, 1
        %s954 = scalar_lea.sflag [#allocation4], %s953
        %s955 = sand.u32 %s185, 1
        %s956 = smul.addr %s955, 2
        %s957 = scalar_lea.vmem [#allocation8], %s956
        // Predicated region
        $region61: #{tpu_custom_call.1} parent=47 // pred_check
          %p958 = pneg %p195
        $region62: #{tpu_custom_call.1} parent=47 // pred_check_branch
          %960 = sbr.rel (%p958) target = $region64
        $region63: #{tpu_custom_call.1} parent=47 // pred_region
          %s962 = ssub.s32 32, 32
          %963 = vsyncadd %s954, %s962
          %s964 = smul.addr %s25, 2
          %s965 = smul.addr %s964, 16
          %s966 = scalar_lea.hbm %s7, %s965
          %s968 = sshll.u32 %s957, 4
          %s969 = int_to_ptr.vmem [resolvable:$true] %s968
          %971 = dma.vmem_to_hbm [thread:$0]  %s969, 32, %s966, %s954
        $region64: #{tpu_custom_call.1} parent=47 // pred_fallthru
          _
      $region48: #{tpu_custom_call.1} parent=5 // pred_fallthru
        _
      %p972 = scmp.le.s32.totalorder 2, %s20
      // Predicated region
      $region65: #{tpu_custom_call.1} parent=5 // pred_check
        %p973 = pneg %p972
      $region66: #{tpu_custom_call.1} parent=5 // pred_check_branch
        %975 = sbr.rel (%p973) target = $region68
      $region67: #{tpu_custom_call.1} parent=5 // pred_region
        %s976 = ssub.s32 %s20, 2
        // Predicated region
        $region69: #{tpu_custom_call.1} parent=67 // pred_check
          %p977 = pneg %p201
        $region70: #{tpu_custom_call.1} parent=67 // pred_check_branch
          %979 = sbr.rel (%p977) target = $region72
        $region71: #{tpu_custom_call.1} parent=67 // pred_region
          %s980 = sand.u32 %s186, 1
          %s981 = scalar_lea.sflag [#allocation4], %s980
          %s982 = sand.u32 %s186, 1
          %s983 = smul.addr %s982, 2
          %s984 = scalar_lea.vmem [#allocation8], %s983
          %985 = dma.done %s981, 32
        $region72: #{tpu_custom_call.1} parent=67 // pred_fallthru
          _
      $region68: #{tpu_custom_call.1} parent=5 // pred_fallthru
        _
    $region6: #{tpu_custom_call.1} parent=1 // loop_footer
      %s24 = sadd.s32 1, %s20
    $region7: #{tpu_custom_call.1} parent=1 // loop_footer_branch
      %19 = sbr.rel target = $region3
    $region8: #{tpu_custom_call.1} parent=1 // loop_exit
      _
    %986 = vsyncpa [#allocation3], 1
    %s987 = scalar_lea.sflag [#allocation3], 1
    %988 = vsyncpa %s987, 1
    %989 = vsyncpa [#allocation6], 1
    %990 = vsyncpa [#allocation4], 1
    %s991 = scalar_lea.sflag [#allocation4], 1
    %992 = vsyncpa %s991, 1

</llo_original>
